<compile_context>
chip_gen: v5e
topology: v5e:2x2
jax: 0.10.0
libtpu: 0.0.40
codegen_flags: <defaults>
</compile_context>

<pallas_src>
import functools

import jax
import jax.numpy as jnp
from jax.experimental import pallas as pl
from jax.experimental.pallas import tpu as pltpu


def _round_up(x, m):
    return (x + m - 1) // m * m


def _addon_masked_kernel(x_ref, w_ref, o_ref, *, n_output_valid):
    """One batch tile: single fused (pre-masked) matmul + f32 softmax."""
    logits = jnp.dot(x_ref[...], w_ref[...], preferred_element_type=jnp.float32)

    n_out_pad = logits.shape[-1]
    if n_out_pad != n_output_valid:
        # Padded output lanes must not participate in the softmax.
        col = jax.lax.broadcasted_iota(jnp.int32, logits.shape, 1)
        logits = jnp.where(col < n_output_valid, logits, -jnp.inf)

    m = jnp.max(logits, axis=-1, keepdims=True)
    e = jnp.exp(logits - m)
    denom = jnp.sum(e, axis=-1, keepdims=True)
    o_ref[...] = (e * pl.reciprocal(denom, approx=True)).astype(o_ref.dtype)


def addon_masked_layer(x, wm_t, mask, wa_t, addon_mask, wc_t, dynamic_mask=None,
                       *, block_b=256, compute_dtype=jnp.bfloat16):
    """Forward pass of AddOnMaskedLayer (n_addon_input>0, n_cat_cov_embed_input>0, bias=False).

    x            : [B, n_input + n_addon + n_cat]            (f32)
    wm_t/wa_t/wc_t: torch weights stored transposed, [n_in, n_output]
    mask/addon_mask: static binary masks, same layout as the torch buffers [n_in, n_output]
    dynamic_mask : optional [n_input + n_addon, n_output]
    """
    B, n_total = x.shape
    n_input, n_output = wm_t.shape
    n_addon = wa_t.shape[0]
    n_cat = wc_t.shape[0]
    assert n_total == n_input + n_addon + n_cat

    # ---- Loop-invariant work done once in the wrapper (f32) -------------------------
    # Fold static and (optional) dynamic masks into the weights and fuse the three
    # weight groups into a single [n_total, n_output] matmul operand.
    wm = wm_t * mask
    wa = wa_t * addon_mask
    if dynamic_mask is not None:
        wm = wm * dynamic_mask[:n_input, :]
        wa = wa * dynamic_mask[n_input:, :]
    w_full = jnp.concatenate([wm, wa, wc_t], axis=0)          # [n_total, n_output], f32

    # Lane-dense output: pad output columns to a multiple of 128 with zero weights.
    n_out_pad = _round_up(n_output, 128)
    if n_out_pad != n_output:
        w_full = jnp.pad(w_full, ((0, 0), (0, n_out_pad - n_output)))

    # Batch tiling: large tiles, ragged tail handled by zero-padding (no dropped rows).
    block_b = max(8, min(block_b, _round_up(B, 8)))
    B_pad = _round_up(B, block_b)
    x_p = x if B_pad == B else jnp.pad(x, ((0, B_pad - B), (0, 0)))

    # Cast matmul operands after the f32 mask folding (bf16 halves HBM/VMEM traffic).
    x_p = x_p.astype(compute_dtype)
    w_full = w_full.astype(compute_dtype)

    kernel = functools.partial(_addon_masked_kernel, n_output_valid=n_output)
    grid = (B_pad // block_b,)

    out = pl.pallas_call(
        kernel,
        out_shape=jax.ShapeDtypeStruct((B_pad, n_out_pad), jnp.float32),
        grid_spec=pltpu.PrefetchScalarGridSpec(
            num_scalar_prefetch=0,
            grid=grid,
            in_specs=[
                pl.BlockSpec((block_b, n_total), lambda i: (i, 0)),     # x tile
                pl.BlockSpec((n_total, n_out_pad), lambda i: (0, 0)),   # fused pre-masked W
            ],
            out_specs=pl.BlockSpec((block_b, n_out_pad), lambda i: (i, 0)),
        ),
        compiler_params=pltpu.CompilerParams(
            dimension_semantics=("parallel",),
            vmem_limit_bytes=48 * 1024 * 1024,
        ),
    )(x_p, w_full)

    return out[:B, :n_output]


def _reference(x, wm_t, mask, wa_t, addon_mask, wc_t, dynamic_mask):
    n_input = wm_t.shape[0]
    n_addon = wa_t.shape[0]
    xm = x[:, :n_input]
    xa = x[:, n_input:n_input + n_addon]
    xc = x[:, n_input + n_addon:]
    dyn_m = dynamic_mask[:n_input] if dynamic_mask is not None else 1.0
    dyn_a = dynamic_mask[n_input:] if dynamic_mask is not None else 1.0
    out = xm @ (wm_t * mask * dyn_m) + xa @ (wa_t * addon_mask * dyn_a) + xc @ wc_t
    return jax.nn.softmax(out, axis=-1)


if __name__ == "__main__":
    # Small, deterministic config. bias=False (module default).
    B = 16
    n_input = 24
    n_addon = 8
    n_cat = 8
    n_output = 32

    key = jax.random.PRNGKey(0)
    ks = jax.random.split(key, 7)

    x = jax.random.normal(ks[0], (B, n_input + n_addon + n_cat), jnp.float32)

    # Masks (binary), same orientation as the torch `mask` / `addon_mask` args: [n_in, n_out].
    mask = (jax.random.uniform(ks[1], (n_input, n_output)) > 0.5).astype(jnp.float32)
    addon_mask = (jax.random.uniform(ks[2], (n_addon, n_output)) > 0.5).astype(jnp.float32)

    # Weights stored transposed ([n_in, n_out]); __init__ pre-masks the weight data
    # (numerically redundant with the forward-time masking, kept for fidelity).
    wm_t = jax.random.normal(ks[3], (n_input, n_output), jnp.float32) * 0.1 * mask
    wa_t = jax.random.normal(ks[4], (n_addon, n_output), jnp.float32) * 0.1 * addon_mask
    wc_t = jax.random.normal(ks[5], (n_cat, n_output), jnp.float32) * 0.1

    # Optional dynamic mask over [n_input + n_addon, n_output].
    dynamic_mask = (jax.random.uniform(ks[6], (n_input + n_addon, n_output)) > 0.3
                    ).astype(jnp.float32)

    ref = _reference(x, wm_t, mask, wa_t, addon_mask, wc_t, dynamic_mask)

    # Default (bf16 matmul operands, f32 accumulation / softmax).
    out_bf16 = addon_masked_layer(x, wm_t, mask, wa_t, addon_mask, wc_t, dynamic_mask)
    out_bf16 = jax.block_until_ready(out_bf16)
    assert out_bf16.shape == (B, n_output)
    assert jnp.allclose(out_bf16, ref, atol=1e-2), "bf16 kernel mismatch vs reference"

    # Full-f32 variant (tighter check).
    out_f32 = addon_masked_layer(x, wm_t, mask, wa_t, addon_mask, wc_t, dynamic_mask,
                                 compute_dtype=jnp.float32)
    out_f32 = jax.block_until_ready(out_f32)
    assert jnp.allclose(out_f32, ref, atol=2e-3), "f32 kernel mismatch vs reference"

    # dynamic_mask=None path (no extra inputs, masks already folded).
    out_nodyn = addon_masked_layer(x, wm_t, mask, wa_t, addon_mask, wc_t, None,
                                   compute_dtype=jnp.float32)
    out_nodyn = jax.block_until_ready(out_nodyn)
    ref_nodyn = _reference(x, wm_t, mask, wa_t, addon_mask, wc_t, None)
    assert jnp.allclose(out_nodyn, ref_nodyn, atol=2e-3), "no-dyn kernel mismatch"

    print("KERNEL_OK")
</pallas_src>

<mosaic_0001>
module attributes {stable_mosaic.version = 11 : i64} {
  func.func @_addon_masked_kernel(%arg0: i32, %arg1: memref<16x40xbf16, #tpu.memory_space<vmem>>, %arg2: memref<40x128xbf16, #tpu.memory_space<vmem>>, %arg3: memref<16x128xf32, #tpu.memory_space<vmem>>) attributes {dimension_semantics = [#tpu.dimension_semantics<parallel>], iteration_bounds = array<i64: 1>, scalar_prefetch = 0 : i64, scratch_operands = 0 : i64, tpu.core_type = #tpu.core_type<tc>, window_params = [{transform_indices = @transform_0, window_bounds = array<i64: 16, 40>}, {pipeline_mode = #tpu.pipeline_mode<synchronous>, transform_indices = @transform_1, window_bounds = array<i64: 40, 128>}, {transform_indices = @transform_2, window_bounds = array<i64: 16, 128>}]} {
    %c0 = arith.constant 0 : index
    %c0_0 = arith.constant 0 : index
    %0 = vector.load %arg1[%c0, %c0_0] : memref<16x40xbf16, #tpu.memory_space<vmem>>, vector<16x40xbf16>
    %c0_1 = arith.constant 0 : index
    %c0_2 = arith.constant 0 : index
    %1 = vector.load %arg2[%c0_1, %c0_2] : memref<40x128xbf16, #tpu.memory_space<vmem>>, vector<40x128xbf16>
    %cst = arith.constant dense<0.000000e+00> : vector<16x128xf32>
    %2 = tpu.matmul %0, %1, %cst {dimension_numbers = #tpu.dot_dimension_numbers<[1], [0], [0], [1], [0, 0, 1, 1], [], []>} : vector<16x40xbf16>, vector<40x128xbf16>, vector<16x128xf32> -> vector<16x128xf32>
    %3 = tpu.iota {dimensions = array<i32: 1>} : vector<16x128xi32>
    %c32_i32 = arith.constant 32 : i32
    %4 = vector.broadcast %c32_i32 : i32 to vector<16x128xi32>
    %5 = arith.cmpi slt, %3, %4 : vector<16x128xi32>
    %cst_3 = arith.constant 0xFF800000 : f32
    %6 = vector.broadcast %cst_3 : f32 to vector<16x128xf32>
    %7 = arith.select %5, %2, %6 : vector<16x128xi1>, vector<16x128xf32>
    %cst_4 = arith.constant dense<0xFF800000> : vector<16xf32>
    %8 = vector.multi_reduction <maximumf>, %7, %cst_4 [1] : vector<16x128xf32> to vector<16xf32>
    %9 = vector.shape_cast %8 : vector<16xf32> to vector<16x1xf32>
    %10 = vector.broadcast %9 : vector<16x1xf32> to vector<16x128xf32>
    %11 = arith.subf %7, %10 : vector<16x128xf32>
    %12 = math.exp %11 : vector<16x128xf32>
    %cst_5 = arith.constant dense<0.000000e+00> : vector<16xf32>
    %13 = vector.multi_reduction <add>, %12, %cst_5 [1] : vector<16x128xf32> to vector<16xf32>
    %14 = vector.shape_cast %13 : vector<16xf32> to vector<16x1xf32>
    %15 = tpu.reciprocal %14 {approx = true} : vector<16x1xf32> -> vector<16x1xf32>
    %16 = vector.broadcast %15 : vector<16x1xf32> to vector<16x128xf32>
    %17 = arith.mulf %12, %16 : vector<16x128xf32>
    %c0_6 = arith.constant 0 : index
    %c0_7 = arith.constant 0 : index
    %18 = vector.load %arg3[%c0_6, %c0_7] : memref<16x128xf32, #tpu.memory_space<vmem>>, vector<16x128xf32>
    tpu.vector_store %arg3[%c0_6, %c0_7], %17 {strides = array<i32>} : memref<16x128xf32, #tpu.memory_space<vmem>>, vector<16x128xf32>,
    return
  }
  func.func @transform_0(%arg0: i32) -> (i32, i32) {
    %c0_i32 = arith.constant 0 : i32
    %c0_i32_0 = arith.constant 0 : i32
    return %arg0, %c0_i32 : i32, i32
  }
  func.func @transform_1(%arg0: i32) -> (i32, i32) {
    %c0_i32 = arith.constant 0 : i32
    %c0_i32_0 = arith.constant 0 : i32
    %c0_i32_1 = arith.constant 0 : i32
    return %c0_i32, %c0_i32_0 : i32, i32
  }
  func.func @transform_2(%arg0: i32) -> (i32, i32) {
    %c0_i32 = arith.constant 0 : i32
    %c0_i32_0 = arith.constant 0 : i32
    return %arg0, %c0_i32 : i32, i32
  }
}

</mosaic_0001>

<llo_original>
// kernel: tpu_custom_call.1
$region0: #{tpu_custom_call.1}
  #allocation0 [shape = 'u32[]', space=smem, size = 0x4, offset = 0x4, fixed_abs, tag = 'smem constant byte address 0x4 - core index']
  #allocation1 [shape = 'u32[72,128]{1,0:T(1,128)}', space=vmem, size = 0x9000, scoped, tag = 'internal scratch']
  %s0 = inlined_call_operand.hbm [shape: bf16[16,40], index: 0, kind: input, shape index: {}]
  %s1 = inlined_call_operand.hbm [shape: bf16[40,128], index: 1, kind: input, shape index: {}]
  %s2 = inlined_call_operand.hbm [shape: f32[16,128], index: 2, kind: output, shape index: {}]
  %s3 = sld [smem:[#allocation0]]
  $region26: #{tpu_custom_call.1} parent=0
    _
  %s5 = ssub.s32 1, %s3
  %s6 = scalar_select 0, %s5, %s3
  $region1: #{tpu_custom_call.1} parent=0
    #allocation2 [shape = 'u8[4096]{0}', space=vmem, size = 0x1000, scoped, tag = 'input window, operand 0, single buffered']
    #allocation3 [shape = 's32[1]{0}', space=sflag, size = 0x4, scoped, tag = 'scoped memory for tpu_custom_call.1']
    #allocation4 [shape = 's32[1]{0}', space=sflag, size = 0x4, scoped, tag = 'scoped memory for tpu_custom_call.1']
    #allocation5 [shape = 'u8[10240]{0}', space=vmem, size = 0x2800, scoped, tag = 'input window, operand 1, single buffered']
    #allocation6 [shape = 's32[1]{0}', space=sflag, size = 0x4, scoped, tag = 'scoped memory for tpu_custom_call.1']
    #allocation7 [shape = 'u8[8192]{0}', space=vmem, size = 0x2000, scoped, tag = 'output window, operand 0, single buffered']
    %7 = vsyncpa [#allocation3], 0
    %8 = vsyncpa [#allocation6], 0
    %9 = vsyncpa [#allocation4], 0
    // Predicated region
    $region2: #{tpu_custom_call.1} parent=1 // pred_check
      _
    $region3: #{tpu_custom_call.1} parent=1 // pred_check_branch
      %11 = sbr.rel (0) target = $region5
    $region4: #{tpu_custom_call.1} parent=1 // pred_region
      %13 = vsyncadd [#allocation3], 0
      %s14 = sshll.u32 %s0, 4
      %s15 = int_to_ptr.hbm [resolvable:$true] %s14
      %s16 = sshll.u32 [#allocation2], 4
      %s17 = int_to_ptr.vmem [resolvable:$true] %s16
      %22 = dma.hbm_to_vmem [thread:$0]  %s15, 128, %s17, [#allocation3], 64, 64, 4
    $region5: #{tpu_custom_call.1} parent=1 // pred_fallthru
      _
    // Predicated region
    $region6: #{tpu_custom_call.1} parent=1 // pred_check
      _
    $region7: #{tpu_custom_call.1} parent=1 // pred_check_branch
      %24 = sbr.rel (0) target = $region9
    $region8: #{tpu_custom_call.1} parent=1 // pred_region
      %26 = vsyncadd [#allocation6], 0
      %s27 = sshll.u32 %s1, 4
      %s28 = int_to_ptr.hbm [resolvable:$true] %s27
      %s29 = sshll.u32 [#allocation5], 4
      %s30 = int_to_ptr.vmem [resolvable:$true] %s29
      %35 = dma.hbm_to_vmem [thread:$0]  %s28, 320, %s30, [#allocation6], 64, 64, 4
    $region9: #{tpu_custom_call.1} parent=1 // pred_fallthru
      _
    // Predicated region
    $region10: #{tpu_custom_call.1} parent=1 // pred_check
      _
    $region11: #{tpu_custom_call.1} parent=1 // pred_check_branch
      %37 = sbr.rel (0) target = $region13
    $region12: #{tpu_custom_call.1} parent=1 // pred_region
      %39 = dma.done [#allocation3], 128
    $region13: #{tpu_custom_call.1} parent=1 // pred_fallthru
      _
    // Predicated region
    $region14: #{tpu_custom_call.1} parent=1 // pred_check
      _
    $region15: #{tpu_custom_call.1} parent=1 // pred_check_branch
      %41 = sbr.rel (0) target = $region17
    $region16: #{tpu_custom_call.1} parent=1 // pred_region
      %43 = dma.done [#allocation6], 320
    $region17: #{tpu_custom_call.1} parent=1 // pred_fallthru
      _
    %v45 = vld [vmem:[#allocation2] sm:$0xf]
    %v46 = vld [vmem:[#allocation2 + $0x4] sm:$0xf]
    %v47 = vld [vmem:[#allocation5] sm:$0xf]
    %v48 = vld [vmem:[#allocation5 + $0x4] sm:$0xf]
    %v49 = vld [vmem:[#allocation5 + $0x8] sm:$0xf]
    %v50 = vld [vmem:[#allocation5 + $0xc] sm:$0xf]
    %v51 = vld [vmem:[#allocation5 + $0x10] sm:$0xf]
    %v54 = vunpack.c.l.b16 %v45
    %v55 = vunpack.c.l.b16 %v46
    %v56 = vpack.c.b16 %v55, %v54
    %v62 = vunpack.c.l.b16 %v47
    %v63 = vunpack.c.l.b16 %v48
    %v64 = vunpack.c.l.b16 %v49
    %v65 = vunpack.c.l.b16 %v50
    %v66 = vunpack.c.l.b16 %v51
    %v67 = vpack.c.b16 %v63, %v62
    %v68 = vpack.c.b16 %v65, %v64
    %v69 = vpack.c.b16 %v66, %v66
    %vm72 = vcmask 326656
    %v74 = vsel %vm72, %v56, 0
    %vm76 = vcmask 1043456
    %v78 = vsel %vm76, %v69, 0
    %80 = vmatpush.bf16.msra.mxu0 0
    %81 = vmatpush.bf16.msra.mxu0 0
    %82 = vmatpush.bf16.msra.mxu0 0
    %83 = vmatpush.bf16.msra.mxu0 0
    %84 = vmatpush.bf16.msra.mxu0 0
    %85 = vmatpush.bf16.msra.mxu0 %v78
    %86 = vmatpush.bf16.msra.mxu0 %v68
    %87 = vmatpush.bf16.msra.mxu0 %v67
    %88 = vmatmul.bf16.gmra.mxu0 %v74
    %v89 = vpop.f32.mrf.mxu0
    %v90 = vadd.f32 0.0, %v89
    %v91 = vpop.f32.mrf.mxu0
    %v92 = vadd.f32 0.0, %v91
    %93 = vdwg.mxu0
    %v94 = vlaneseq
    %v95 = vand.u32 %v94, 127
    %vm96 = vcmp.lt.s32.totalorder %v95, 32
    %v97 = vsel %vm96, %v90, -inf
    %v98 = vsel %vm96, %v92, -inf
    %99 = vmax.xlane.f32.xlu0 %v97
    %v100 = vpop.xlane.xlu0 %99
    %101 = vmax.xlane.f32.xlu0 %v98
    %v102 = vpop.xlane.xlu0 %101
    %v103 = vsub.f32 %v97, %v100
    %v104 = vsub.f32 %v98, %v102
    %v105 = vmul.f32 %v103, 1.442695
    %v106 = vpow.pop %v105
    %v107 = vmul.f32 %v104, 1.442695
    %v108 = vpow.pop %v107
    %109 = vadd.xlane.f32.xlu0 %v106
    %v110 = vpop.xlane.xlu0 %109
    %111 = vadd.xlane.f32.xlu0 %v108
    %v112 = vpop.xlane.xlu0 %111
    %v113 = vrcp.pop %v110
    %v114 = vrcp.pop %v112
    %v115 = vmul.f32 %v106, %v113
    %v116 = vmul.f32 %v108, %v114
    %117 = vst [vmem:[#allocation7] sm:$0xff] %v115
    %118 = vst [vmem:[#allocation7 + $0x8] sm:$0xff] %v116
    // Predicated region
    $region18: #{tpu_custom_call.1} parent=1 // pred_check
      _
    $region19: #{tpu_custom_call.1} parent=1 // pred_check_branch
      %120 = sbr.rel (0) target = $region21
    $region20: #{tpu_custom_call.1} parent=1 // pred_region
      %122 = vsyncadd [#allocation4], 0
      %s123 = sshll.u32 [#allocation7], 4
      %s124 = int_to_ptr.vmem [resolvable:$true] %s123
      %s125 = sshll.u32 %s2, 4
      %s126 = int_to_ptr.hbm [resolvable:$true] %s125
      %131 = dma.vmem_to_hbm [thread:$0]  %s124, 256, %s126, [#allocation4], 128, 128, 8
    $region21: #{tpu_custom_call.1} parent=1 // pred_fallthru
      _
    // Predicated region
    $region22: #{tpu_custom_call.1} parent=1 // pred_check
      _
    $region23: #{tpu_custom_call.1} parent=1 // pred_check_branch
      %133 = sbr.rel (0) target = $region25
    $region24: #{tpu_custom_call.1} parent=1 // pred_region
      %135 = dma.done [#allocation4], 256
    $region25: #{tpu_custom_call.1} parent=1 // pred_fallthru
      _
    %136 = vsyncpa [#allocation3], 1
    %137 = vsyncpa [#allocation6], 1
    %138 = vsyncpa [#allocation4], 1

</llo_original>
